<compile_context>
chip_gen: v7x
topology: tpu7x:2x2x1
jax: 0.10.0
libtpu: 0.0.40
codegen_flags: <defaults>
</compile_context>

<pallas_src>
import jax
import jax.numpy as jnp
from jax.experimental import pallas as pl
from jax.experimental.pallas import tpu as pltpu


def _qgcn_last_kernel(a_ref, x0_ref, x1_ref, wl_ref, wr_ref, bl_ref, br_ref, o_ref):
    """One grid step processes BB samples.

    a_ref : (BB, N, N)  compute dtype     x0_ref: (BB, N, R)   x1_ref: (BB, N, L)
    wl_ref: (1, L) f32                    wr_ref: (R, OUT) f32 (pre-transposed)
    bl_ref: (1,)  f32 scalar in SMEM      br_ref: (1, OUT) f32
    o_ref : (1, BB, OUT) f32
    """
    f32 = jnp.float32
    A = a_ref[...].astype(f32)            # (BB, N, N)
    x0 = x0_ref[...].astype(f32)          # (BB, N, R)
    x1 = x1_ref[...].astype(f32)          # (BB, N, L)
    wl = wl_ref[...]                       # (1, L)
    wr = wr_ref[...]                       # (R, OUT)
    bl = bl_ref[0]                         # scalar
    br = br_ref[...]                       # (1, OUT)

    # u[b, n] = sum_l x1[b, n, l] * wl[l]        (tiny lane reduction)
    u = jnp.sum(x1 * wl[None, :, :], axis=-1)                      # (BB, N)
    # v[b, m] = sum_n u[b, n] * A[b, n, m] + bl  (sublane reduction over n)
    v = jnp.sum(A * u[:, :, None], axis=1) + bl                    # (BB, N)
    # s[b, r] = sum_n v[b, n] * x0[b, n, r]
    s = jnp.sum(x0 * v[:, :, None], axis=1)                        # (BB, R)
    # out[b, o] = sum_r s[b, r] * wr[r, o] + br[o]
    out = jnp.sum(s[:, :, None] * wr[None, :, :], axis=1) + br     # (BB, OUT)

    o_ref[...] = out[None, :, :].astype(o_ref.dtype)


def _pick_block_b(B, N, R, L, cd_bytes, max_block_b):
    """Samples per grid step: amortize per-step overhead, keep grid >= 2, fit VMEM."""
    per_sample_elems = N * N + N * R + N * L
    # double-buffered operands in compute dtype + one f32 working copy in-kernel
    per_sample_bytes = per_sample_elems * (2 * cd_bytes + 4)
    vmem_budget = 8 * 1024 * 1024          # conservative vs. default scoped VMEM
    max_by_vmem = max(1, vmem_budget // per_sample_bytes)
    target = max(1, min(max_block_b, max_by_vmem, B // 2 if B > 1 else 1))
    for cand in range(int(target), 0, -1):
        if B % cand == 0:
            return cand
    return 1


def qgcn_last_layer(A, x0, x1, w_left, b_left, w_right, b_right,
                    *, compute_dtype=jnp.bfloat16, max_block_b=128):
    """A:(B,N,N) x0:(B,N,R) x1:(B,N,L); w_left:(1,L) b_left:(1,) w_right:(OUT,R) b_right:(OUT,)."""
    B, N, _ = A.shape
    R = x0.shape[-1]
    L = x1.shape[-1]
    out_dim = w_right.shape[0]

    cd_bytes = jnp.dtype(compute_dtype).itemsize
    bb = _pick_block_b(B, N, R, L, cd_bytes, max_block_b)
    nb = B // bb

    # Cast the large batch-sized operands for the DMA; weights/biases stay f32 (tiny).
    Ac = A.astype(compute_dtype)
    x0c = x0.astype(compute_dtype)
    x1c = x1.astype(compute_dtype)
    wl = w_left.reshape(1, L).astype(jnp.float32)
    bl = b_left.reshape(1).astype(jnp.float32)                 # SMEM scalar
    wr = jnp.transpose(w_right).astype(jnp.float32)            # (R, OUT) pre-transposed
    br = b_right.reshape(1, out_dim).astype(jnp.float32)

    flops = int(2 * B * (N * L + N * N + N * R + R * out_dim))
    bytes_accessed = int(B * (N * N + N * R + N * L) * cd_bytes
                         + B * out_dim * 4
                         + (L + 1 + R * out_dim + out_dim) * 4)

    grid_spec = pltpu.PrefetchScalarGridSpec(
        num_scalar_prefetch=0,
        grid=(nb,),
        in_specs=[
            pl.BlockSpec((bb, N, N), lambda b: (b, 0, 0)),
            pl.BlockSpec((bb, N, R), lambda b: (b, 0, 0)),
            pl.BlockSpec((bb, N, L), lambda b: (b, 0, 0)),
            pl.BlockSpec((1, L), lambda b: (0, 0)),
            pl.BlockSpec((R, out_dim), lambda b: (0, 0)),
            pl.BlockSpec(memory_space=pltpu.MemorySpace.SMEM),   # b_left scalar
            pl.BlockSpec((1, out_dim), lambda b: (0, 0)),
        ],
        # 3-D output so the block's last two dims always equal the full array dims.
        out_specs=pl.BlockSpec((1, bb, out_dim), lambda b: (b, 0, 0)),
    )

    out3 = pl.pallas_call(
        _qgcn_last_kernel,
        out_shape=jax.ShapeDtypeStruct((nb, bb, out_dim), jnp.float32),
        grid_spec=grid_spec,
        compiler_params=pltpu.CompilerParams(
            dimension_semantics=("parallel",),
        ),
        cost_estimate=pl.CostEstimate(flops=flops, transcendentals=0,
                                      bytes_accessed=bytes_accessed),
    )(Ac, x0c, x1c, wl, wr, bl, br)

    return out3.reshape(B, out_dim)


def _reference(A, x0, x1, w_left, b_left, w_right, b_right):
    # Pure-JAX replica of the PyTorch forward, full f32 precision.
    hp = jax.lax.Precision.HIGHEST
    x1_A = jnp.einsum("bnl,bnm->blm", x1, A, precision=hp)                 # (B, L, N)
    v = jnp.einsum("bln,ol->bno", x1_A, w_left, precision=hp) + b_left     # (B, N, 1)
    s = jnp.einsum("bno,bnr->bor", v, x0, precision=hp)                    # (B, 1, R)
    out = jnp.einsum("bor,dr->bod", s, w_right, precision=hp) + b_right    # (B, 1, OUT)
    return out[:, 0, :]


if __name__ == "__main__":
    # Small shapes consistent with the module: batch=2, nodes N=16,
    # left_in_dim=4, right_in_dim=8, out_dim=6.
    B, N, L, R, OUT = 2, 16, 4, 8, 6

    key = jax.random.PRNGKey(0)
    kA, kx0, kx1, kwl, kbl, kwr, kbr = jax.random.split(key, 7)

    A = jax.random.normal(kA, (B, N, N), dtype=jnp.float32)
    x0 = jax.random.normal(kx0, (B, N, R), dtype=jnp.float32)
    x1 = jax.random.normal(kx1, (B, N, L), dtype=jnp.float32)

    # Parameter init mirroring reset_parameters(out_dim); biases use PyTorch Linear default.
    w_left = jax.random.uniform(kwl, (1, L), jnp.float32, -1.0, 1.0)
    b_left = jax.random.uniform(kbl, (1,), jnp.float32, -1.0 / (L ** 0.5), 1.0 / (L ** 0.5))
    w_right = jax.random.uniform(kwr, (OUT, R), jnp.float32,
                                 -1.0 / (OUT ** 0.5), 1.0 / (OUT ** 0.5))
    b_right = jax.random.uniform(kbr, (OUT,), jnp.float32,
                                 -1.0 / (R ** 0.5), 1.0 / (R ** 0.5))

    ref = _reference(A, x0, x1, w_left, b_left, w_right, b_right)

    # Exact-semantics check: f32 compute path (pure VPU/XLU math, f32 accumulation).
    out_f32 = qgcn_last_layer(A, x0, x1, w_left, b_left, w_right, b_right,
                              compute_dtype=jnp.float32)
    out_f32 = jax.block_until_ready(out_f32)
    assert out_f32.shape == (B, OUT), out_f32.shape
    assert jnp.allclose(out_f32, ref, atol=1e-3, rtol=1e-3), (out_f32, ref)

    # Default bf16-operand path (halves HBM traffic); looser tolerance for bf16 operands.
    out_bf16 = qgcn_last_layer(A, x0, x1, w_left, b_left, w_right, b_right)
    out_bf16 = jax.block_until_ready(out_bf16)
    assert out_bf16.shape == (B, OUT), out_bf16.shape
    rel_err = jnp.linalg.norm(out_bf16 - ref) / jnp.linalg.norm(ref)
    assert rel_err < 0.05, rel_err

    print("KERNEL_OK")
</pallas_src>

<mosaic_0001>
module attributes {stable_mosaic.version = 11 : i64} {
  func.func @_qgcn_last_kernel(%arg0: i32, %arg1: memref<1x16x16xf32, #tpu.memory_space<vmem>>, %arg2: memref<1x16x8xf32, #tpu.memory_space<vmem>>, %arg3: memref<1x16x4xf32, #tpu.memory_space<vmem>>, %arg4: memref<1x4xf32, #tpu.memory_space<vmem>>, %arg5: memref<8x6xf32, #tpu.memory_space<vmem>>, %arg6: memref<1xf32, #tpu.memory_space<smem>>, %arg7: memref<1x6xf32, #tpu.memory_space<vmem>>, %arg8: memref<1x1x6xf32, #tpu.memory_space<vmem>>) attributes {dimension_semantics = [#tpu.dimension_semantics<parallel>], iteration_bounds = array<i64: 2>, scalar_prefetch = 0 : i64, scratch_operands = 0 : i64, tpu.core_type = #tpu.core_type<tc>, window_params = [{transform_indices = @transform_0, window_bounds = array<i64: 1, 16, 16>}, {transform_indices = @transform_1, window_bounds = array<i64: 1, 16, 8>}, {transform_indices = @transform_2, window_bounds = array<i64: 1, 16, 4>}, {pipeline_mode = #tpu.pipeline_mode<synchronous>, transform_indices = @transform_3, window_bounds = array<i64: 1, 4>}, {pipeline_mode = #tpu.pipeline_mode<synchronous>, transform_indices = @transform_4, window_bounds = array<i64: 8, 6>}, {transform_indices = @transform_5, window_bounds = array<i64: 1>}, {pipeline_mode = #tpu.pipeline_mode<synchronous>, transform_indices = @transform_6, window_bounds = array<i64: 1, 6>}, {transform_indices = @transform_7, window_bounds = array<i64: 1, 1, 6>}]} {
    %c0 = arith.constant 0 : index
    %c0_0 = arith.constant 0 : index
    %c0_1 = arith.constant 0 : index
    %0 = vector.load %arg1[%c0, %c0_0, %c0_1] : memref<1x16x16xf32, #tpu.memory_space<vmem>>, vector<1x16x16xf32>
    %c0_2 = arith.constant 0 : index
    %c0_3 = arith.constant 0 : index
    %c0_4 = arith.constant 0 : index
    %1 = vector.load %arg2[%c0_2, %c0_3, %c0_4] : memref<1x16x8xf32, #tpu.memory_space<vmem>>, vector<1x16x8xf32>
    %c0_5 = arith.constant 0 : index
    %c0_6 = arith.constant 0 : index
    %c0_7 = arith.constant 0 : index
    %2 = vector.load %arg3[%c0_5, %c0_6, %c0_7] : memref<1x16x4xf32, #tpu.memory_space<vmem>>, vector<1x16x4xf32>
    %c0_8 = arith.constant 0 : index
    %c0_9 = arith.constant 0 : index
    %3 = vector.load %arg4[%c0_8, %c0_9] : memref<1x4xf32, #tpu.memory_space<vmem>>, vector<1x4xf32>
    %c0_10 = arith.constant 0 : index
    %c0_11 = arith.constant 0 : index
    %4 = vector.load %arg5[%c0_10, %c0_11] : memref<8x6xf32, #tpu.memory_space<vmem>>, vector<8x6xf32>
    %c0_12 = arith.constant 0 : index
    %5 = memref.load %arg6[%c0_12] : memref<1xf32, #tpu.memory_space<smem>>
    %c0_13 = arith.constant 0 : index
    %c0_14 = arith.constant 0 : index
    %6 = vector.load %arg7[%c0_13, %c0_14] : memref<1x6xf32, #tpu.memory_space<vmem>>, vector<1x6xf32>
    %7 = vector.shape_cast %3 : vector<1x4xf32> to vector<1x1x4xf32>
    %8 = vector.broadcast %7 : vector<1x1x4xf32> to vector<1x16x4xf32>
    %9 = arith.mulf %2, %8 : vector<1x16x4xf32>
    %cst = arith.constant dense<0.000000e+00> : vector<1x16xf32>
    %10 = vector.multi_reduction <add>, %9, %cst [2] : vector<1x16x4xf32> to vector<1x16xf32>
    %11 = vector.shape_cast %10 : vector<1x16xf32> to vector<1x16x1xf32>
    %12 = vector.broadcast %11 : vector<1x16x1xf32> to vector<1x16x16xf32>
    %13 = arith.mulf %0, %12 : vector<1x16x16xf32>
    %cst_15 = arith.constant dense<0.000000e+00> : vector<1x16xf32>
    %14 = vector.multi_reduction <add>, %13, %cst_15 [1] : vector<1x16x16xf32> to vector<1x16xf32>
    %15 = vector.broadcast %5 : f32 to vector<1x16xf32>
    %16 = arith.addf %14, %15 : vector<1x16xf32>
    %17 = vector.shape_cast %16 : vector<1x16xf32> to vector<1x16x1xf32>
    %18 = vector.broadcast %17 : vector<1x16x1xf32> to vector<1x16x8xf32>
    %19 = arith.mulf %1, %18 : vector<1x16x8xf32>
    %cst_16 = arith.constant dense<0.000000e+00> : vector<1x8xf32>
    %20 = vector.multi_reduction <add>, %19, %cst_16 [1] : vector<1x16x8xf32> to vector<1x8xf32>
    %21 = vector.shape_cast %20 : vector<1x8xf32> to vector<1x8x1xf32>
    %22 = vector.shape_cast %4 : vector<8x6xf32> to vector<1x8x6xf32>
    %23 = vector.broadcast %21 : vector<1x8x1xf32> to vector<1x8x6xf32>
    %24 = arith.mulf %23, %22 : vector<1x8x6xf32>
    %cst_17 = arith.constant dense<0.000000e+00> : vector<1x6xf32>
    %25 = vector.multi_reduction <add>, %24, %cst_17 [1] : vector<1x8x6xf32> to vector<1x6xf32>
    %26 = arith.addf %25, %6 : vector<1x6xf32>
    %27 = vector.shape_cast %26 : vector<1x6xf32> to vector<1x1x6xf32>
    %c0_18 = arith.constant 0 : index
    %c0_19 = arith.constant 0 : index
    %c0_20 = arith.constant 0 : index
    %28 = vector.load %arg8[%c0_18, %c0_19, %c0_20] : memref<1x1x6xf32, #tpu.memory_space<vmem>>, vector<1x1x6xf32>
    tpu.vector_store %arg8[%c0_18, %c0_19, %c0_20], %27 {strides = array<i32>} : memref<1x1x6xf32, #tpu.memory_space<vmem>>, vector<1x1x6xf32>,
    return
  }
  func.func @transform_0(%arg0: i32) -> (i32, i32, i32) {
    %c0_i32 = arith.constant 0 : i32
    %c0_i32_0 = arith.constant 0 : i32
    %c0_i32_1 = arith.constant 0 : i32
    return %arg0, %c0_i32, %c0_i32_0 : i32, i32, i32
  }
  func.func @transform_1(%arg0: i32) -> (i32, i32, i32) {
    %c0_i32 = arith.constant 0 : i32
    %c0_i32_0 = arith.constant 0 : i32
    %c0_i32_1 = arith.constant 0 : i32
    return %arg0, %c0_i32, %c0_i32_0 : i32, i32, i32
  }
  func.func @transform_2(%arg0: i32) -> (i32, i32, i32) {
    %c0_i32 = arith.constant 0 : i32
    %c0_i32_0 = arith.constant 0 : i32
    %c0_i32_1 = arith.constant 0 : i32
    return %arg0, %c0_i32, %c0_i32_0 : i32, i32, i32
  }
  func.func @transform_3(%arg0: i32) -> (i32, i32) {
    %c0_i32 = arith.constant 0 : i32
    %c0_i32_0 = arith.constant 0 : i32
    %c0_i32_1 = arith.constant 0 : i32
    return %c0_i32, %c0_i32_0 : i32, i32
  }
  func.func @transform_4(%arg0: i32) -> (i32, i32) {
    %c0_i32 = arith.constant 0 : i32
    %c0_i32_0 = arith.constant 0 : i32
    %c0_i32_1 = arith.constant 0 : i32
    return %c0_i32, %c0_i32_0 : i32, i32
  }
  func.func @transform_5(%arg0: i32) -> i32 {
    %c0_i32 = arith.constant 0 : i32
    %c0_i32_0 = arith.constant 0 : i32
    return %c0_i32 : i32
  }
  func.func @transform_6(%arg0: i32) -> (i32, i32) {
    %c0_i32 = arith.constant 0 : i32
    %c0_i32_0 = arith.constant 0 : i32
    %c0_i32_1 = arith.constant 0 : i32
    return %c0_i32, %c0_i32_0 : i32, i32
  }
  func.func @transform_7(%arg0: i32) -> (i32, i32, i32) {
    %c0_i32 = arith.constant 0 : i32
    %c0_i32_0 = arith.constant 0 : i32
    %c0_i32_1 = arith.constant 0 : i32
    return %arg0, %c0_i32, %c0_i32_0 : i32, i32, i32
  }
}

</mosaic_0001>

<llo_original>
// kernel: tpu_custom_call.1
$region0: #{tpu_custom_call.1}
  #allocation0 [shape = 'u32[]', space=smem, size = 0x4, offset = 0x4, fixed_abs, tag = 'smem constant byte address 0x4 - core index']
  #allocation1 [shape = 'u32[144,128]{1,0:T(1,128)}', space=vmem, size = 0x12000, scoped, tag = 'internal scratch']
  #allocation2 [shape = 'f32[1]{0:T(128)S(6)}', space=smem, size = 0x200, scoped, tag = 'scoped memory for tpu_custom_call.1']
  %s0 = inlined_call_operand.vmem [shape: f32[2,16,16], index: 0, kind: input, shape index: {}]
  %s1 = inlined_call_operand.vmem [shape: f32[2,16,8], index: 1, kind: input, shape index: {}]
  %s2 = inlined_call_operand.vmem [shape: f32[2,16,4], index: 2, kind: input, shape index: {}]
  %s3 = inlined_call_operand.vmem [shape: f32[1,4], index: 3, kind: input, shape index: {}]
  %s4 = inlined_call_operand.vmem [shape: f32[8,6], index: 4, kind: input, shape index: {}]
  %s5 = inlined_call_operand.<no memory space> [shape: f32[1], index: 5, kind: input, shape index: {}]
  %s6 = inlined_call_operand.vmem [shape: f32[1,6], index: 6, kind: input, shape index: {}]
  %s7 = inlined_call_operand.hbm [shape: f32[2,1,6], index: 7, kind: output, shape index: {}]
  %s8 = sld [smem:[#allocation0]]
  $region61: #{tpu_custom_call.1} parent=0
    _
  %s10 = ssub.s32 1, %s8
  %s11 = scalar_select 0, %s10, %s8
  %12 = sst [smem:[#allocation2]] %s5
  $region1: #{tpu_custom_call.1} parent=0
    #allocation3 [shape = 'u8[1024]{0}', space=vmem, size = 0x400, scoped, tag = 'output window, operand 0']
    #allocation4 [shape = 's32[2]{0}', space=sflag, size = 0x8, scoped, tag = 'scoped memory for tpu_custom_call.1']
    %13 = vsyncpa [#allocation4], 0
    %s14 = scalar_lea.sflag [#allocation4], 1
    %15 = vsyncpa %s14, 0
    loop: start=0, step=1, limit=4
    $region2: #{tpu_custom_call.1} parent=1 // loop_pre_header
      _
    $region3: #{tpu_custom_call.1} parent=1 // loop_header
      %s17 = sphi 0, %s21
      %p18 = scmp.ge.s32.totalorder %s17, 4
      %s27 = sphi 0, %s29
      %s30 = sphi 0, %s27
      %s31 = sphi 0, %s30
      %s47 = sphi 0, %s31
      %s53 = sphi 0, %s55
      %s56 = sphi 0, %s53
      %s57 = sphi 0, %s56
      %s73 = sphi 0, %s57
      %s79 = sphi 0, %s81
      %s82 = sphi 0, %s79
      %s83 = sphi 0, %s82
      %s99 = sphi 0, %s83
      %s103 = sphi 0, %s103
      %s105 = sphi 0, %s103
      %s106 = sphi 0, %s105
      %s120 = sphi 0, %s106
      %s124 = sphi 0, %s124
      %s126 = sphi 0, %s124
      %s127 = sphi 0, %s126
      %s141 = sphi 0, %s127
      %s145 = sphi 0, %s145
      %s147 = sphi 0, %s145
      %s148 = sphi 0, %s147
      %s162 = sphi 0, %s148
      %s166 = sphi 0, %s166
      %s168 = sphi 0, %s166
      %s169 = sphi 0, %s168
      %s183 = sphi 0, %s169
      %s189 = sphi 0, %s191
      %s192 = sphi 0, %s189
      %s193 = sphi 0, %s192
      %s209 = sphi 0, %s193
    $region4: #{tpu_custom_call.1} parent=1 // loop_header_branch
      %20 = sbr.rel (%p18) target = $region8
    $region5: #{tpu_custom_call.1} parent=1 // loop_body
      %s22 = ssub.s32 %s17, 1
      %s23 = ssub.s32 %s17, 2
      %s24 = sadd.s32 %s17, 1
      %s25 = ssub.s32 %s17, %s24
      %p26 = scmp.eq.s32.totalorder %s25, 0
      %s28 = sadd.s32 %s27, 1
      %s29 = scalar_select %p26, %s27, %s28
      %p32 = pneg %p26
      %p33 = scmp.eq.s32.totalorder %s17, 1
      %p34 = por %p32, %p33
      %p35 = scmp.ne.s32.totalorder %s27, %s30
      %p36 = scmp.eq.s32.totalorder %s17, 0
      %p37 = por %p35, %p36
      %p38 = scmp.ne.s32.totalorder %s27, %s30
      %p39 = scmp.eq.s32.totalorder %s22, 1
      %p40 = por %p38, %p39
      %p41 = scmp.ne.s32.totalorder %s30, %s31
      %p42 = scmp.eq.s32.totalorder %s22, 0
      %p43 = por %p41, %p42
      %p44 = scmp.ne.s32.totalorder %s30, %s31
      %p45 = scmp.eq.s32.totalorder %s23, 1
      %p46 = por %p44, %p45
      %p48 = scmp.ne.s32.totalorder %s31, %s47
      %p49 = scmp.eq.s32.totalorder %s23, 0
      %p50 = por %p48, %p49
      %s51 = ssub.s32 %s17, %s24
      %p52 = scmp.eq.s32.totalorder %s51, 0
      %s54 = sadd.s32 %s53, 1
      %s55 = scalar_select %p52, %s53, %s54
      %p58 = pneg %p52
      %p59 = scmp.eq.s32.totalorder %s17, 1
      %p60 = por %p58, %p59
      %p61 = scmp.ne.s32.totalorder %s53, %s56
      %p62 = scmp.eq.s32.totalorder %s17, 0
      %p63 = por %p61, %p62
      %p64 = scmp.ne.s32.totalorder %s53, %s56
      %p65 = scmp.eq.s32.totalorder %s22, 1
      %p66 = por %p64, %p65
      %p67 = scmp.ne.s32.totalorder %s56, %s57
      %p68 = scmp.eq.s32.totalorder %s22, 0
      %p69 = por %p67, %p68
      %p70 = scmp.ne.s32.totalorder %s56, %s57
      %p71 = scmp.eq.s32.totalorder %s23, 1
      %p72 = por %p70, %p71
      %p74 = scmp.ne.s32.totalorder %s57, %s73
      %p75 = scmp.eq.s32.totalorder %s23, 0
      %p76 = por %p74, %p75
      %s77 = ssub.s32 %s17, %s24
      %p78 = scmp.eq.s32.totalorder %s77, 0
      %s80 = sadd.s32 %s79, 1
      %s81 = scalar_select %p78, %s79, %s80
      %p84 = pneg %p78
      %p85 = scmp.eq.s32.totalorder %s17, 1
      %p86 = por %p84, %p85
      %p87 = scmp.ne.s32.totalorder %s79, %s82
      %p88 = scmp.eq.s32.totalorder %s17, 0
      %p89 = por %p87, %p88
      %p90 = scmp.ne.s32.totalorder %s79, %s82
      %p91 = scmp.eq.s32.totalorder %s22, 1
      %p92 = por %p90, %p91
      %p93 = scmp.ne.s32.totalorder %s82, %s83
      %p94 = scmp.eq.s32.totalorder %s22, 0
      %p95 = por %p93, %p94
      %p96 = scmp.ne.s32.totalorder %s82, %s83
      %p97 = scmp.eq.s32.totalorder %s23, 1
      %p98 = por %p96, %p97
      %p100 = scmp.ne.s32.totalorder %s83, %s99
      %p101 = scmp.eq.s32.totalorder %s23, 0
      %p102 = por %p100, %p101
      %s104 = sadd.s32 %s103, 1
      %p107 = scmp.eq.s32.totalorder %s17, 1
      %p108 = scmp.ne.s32.totalorder %s103, %s105
      %p109 = scmp.eq.s32.totalorder %s17, 0
      %p110 = por %p108, %p109
      %p111 = scmp.ne.s32.totalorder %s103, %s105
      %p112 = scmp.eq.s32.totalorder %s22, 1
      %p113 = por %p111, %p112
      %p114 = scmp.ne.s32.totalorder %s105, %s106
      %p115 = scmp.eq.s32.totalorder %s22, 0
      %p116 = por %p114, %p115
      %p117 = scmp.ne.s32.totalorder %s105, %s106
      %p118 = scmp.eq.s32.totalorder %s23, 1
      %p119 = por %p117, %p118
      %p121 = scmp.ne.s32.totalorder %s106, %s120
      %p122 = scmp.eq.s32.totalorder %s23, 0
      %p123 = por %p121, %p122
      %s125 = sadd.s32 %s124, 1
      %p128 = scmp.eq.s32.totalorder %s17, 1
      %p129 = scmp.ne.s32.totalorder %s124, %s126
      %p130 = scmp.eq.s32.totalorder %s17, 0
      %p131 = por %p129, %p130
      %p132 = scmp.ne.s32.totalorder %s124, %s126
      %p133 = scmp.eq.s32.totalorder %s22, 1
      %p134 = por %p132, %p133
      %p135 = scmp.ne.s32.totalorder %s126, %s127
      %p136 = scmp.eq.s32.totalorder %s22, 0
      %p137 = por %p135, %p136
      %p138 = scmp.ne.s32.totalorder %s126, %s127
      %p139 = scmp.eq.s32.totalorder %s23, 1
      %p140 = por %p138, %p139
      %p142 = scmp.ne.s32.totalorder %s127, %s141
      %p143 = scmp.eq.s32.totalorder %s23, 0
      %p144 = por %p142, %p143
      %s146 = sadd.s32 %s145, 1
      %p149 = scmp.eq.s32.totalorder %s17, 1
      %p150 = scmp.ne.s32.totalorder %s145, %s147
      %p151 = scmp.eq.s32.totalorder %s17, 0
      %p152 = por %p150, %p151
      %p153 = scmp.ne.s32.totalorder %s145, %s147
      %p154 = scmp.eq.s32.totalorder %s22, 1
      %p155 = por %p153, %p154
      %p156 = scmp.ne.s32.totalorder %s147, %s148
      %p157 = scmp.eq.s32.totalorder %s22, 0
      %p158 = por %p156, %p157
      %p159 = scmp.ne.s32.totalorder %s147, %s148
      %p160 = scmp.eq.s32.totalorder %s23, 1
      %p161 = por %p159, %p160
      %p163 = scmp.ne.s32.totalorder %s148, %s162
      %p164 = scmp.eq.s32.totalorder %s23, 0
      %p165 = por %p163, %p164
      %s167 = sadd.s32 %s166, 1
      %p170 = scmp.eq.s32.totalorder %s17, 1
      %p171 = scmp.ne.s32.totalorder %s166, %s168
      %p172 = scmp.eq.s32.totalorder %s17, 0
      %p173 = por %p171, %p172
      %p174 = scmp.ne.s32.totalorder %s166, %s168
      %p175 = scmp.eq.s32.totalorder %s22, 1
      %p176 = por %p174, %p175
      %p177 = scmp.ne.s32.totalorder %s168, %s169
      %p178 = scmp.eq.s32.totalorder %s22, 0
      %p179 = por %p177, %p178
      %p180 = scmp.ne.s32.totalorder %s168, %s169
      %p181 = scmp.eq.s32.totalorder %s23, 1
      %p182 = por %p180, %p181
      %p184 = scmp.ne.s32.totalorder %s169, %s183
      %p185 = scmp.eq.s32.totalorder %s23, 0
      %p186 = por %p184, %p185
      %s187 = ssub.s32 %s17, %s24
      %p188 = scmp.eq.s32.totalorder %s187, 0
      %s190 = sadd.s32 %s189, 1
      %s191 = scalar_select %p188, %s189, %s190
      %p194 = pneg %p188
      %p195 = scmp.eq.s32.totalorder %s17, 1
      %p196 = por %p194, %p195
      %p197 = scmp.ne.s32.totalorder %s189, %s192
      %p198 = scmp.eq.s32.totalorder %s17, 0
      %p199 = por %p197, %p198
      %p200 = scmp.ne.s32.totalorder %s189, %s192
      %p201 = scmp.eq.s32.totalorder %s22, 1
      %p202 = por %p200, %p201
      %p203 = scmp.ne.s32.totalorder %s192, %s193
      %p204 = scmp.eq.s32.totalorder %s22, 0
      %p205 = por %p203, %p204
      %p206 = scmp.ne.s32.totalorder %s192, %s193
      %p207 = scmp.eq.s32.totalorder %s23, 1
      %p208 = por %p206, %p207
      %p210 = scmp.ne.s32.totalorder %s193, %s209
      %p211 = scmp.eq.s32.totalorder %s23, 0
      %p212 = por %p210, %p211
      %p213 = scmp.le.s32.totalorder 1, %s17
      %p214 = scmp.lt.s32.totalorder %s17, 3
      %p215 = pnand %p213, %p214
      %p216 = pneg %p215
      // Predicated region
      $region9: #{tpu_custom_call.1} parent=5 // pred_check
        _
      $region10: #{tpu_custom_call.1} parent=5 // pred_check_branch
        %218 = sbr.rel (%p215) target = $region12
      $region11: #{tpu_custom_call.1} parent=5 // pred_region
        %s219 = ssub.s32 %s17, 1
        // Predicated region
        $region13: #{tpu_custom_call.1} parent=11 // pred_check
          %p220 = pneg %p116
        $region14: #{tpu_custom_call.1} parent=11 // pred_check_branch
          %222 = sbr.rel (%p220) target = $region16
        $region15: #{tpu_custom_call.1} parent=11 // pred_region
          _
        $region16: #{tpu_custom_call.1} parent=11 // pred_fallthru
          _
        // Predicated region
        $region17: #{tpu_custom_call.1} parent=11 // pred_check
          %p223 = pneg %p137
        $region18: #{tpu_custom_call.1} parent=11 // pred_check_branch
          %225 = sbr.rel (%p223) target = $region20
        $region19: #{tpu_custom_call.1} parent=11 // pred_region
          _
        $region20: #{tpu_custom_call.1} parent=11 // pred_fallthru
          _
        // Predicated region
        $region21: #{tpu_custom_call.1} parent=11 // pred_check
          %p226 = pneg %p158
        $region22: #{tpu_custom_call.1} parent=11 // pred_check_branch
          %228 = sbr.rel (%p226) target = $region24
        $region23: #{tpu_custom_call.1} parent=11 // pred_region
          _
        $region24: #{tpu_custom_call.1} parent=11 // pred_fallthru
          _
        // Predicated region
        $region25: #{tpu_custom_call.1} parent=11 // pred_check
          %p229 = pneg %p179
        $region26: #{tpu_custom_call.1} parent=11 // pred_check_branch
          %231 = sbr.rel (%p229) target = $region28
        $region27: #{tpu_custom_call.1} parent=11 // pred_region
          _
        $region28: #{tpu_custom_call.1} parent=11 // pred_fallthru
          _
      $region12: #{tpu_custom_call.1} parent=5 // pred_fallthru
        _
      %p232 = scmp.lt.s32.totalorder %s17, 2
      // Predicated region
      $region29: #{tpu_custom_call.1} parent=5 // pred_check
        %p233 = pneg %p232
      $region30: #{tpu_custom_call.1} parent=5 // pred_check_branch
        %235 = sbr.rel (%p233) target = $region32
      $region31: #{tpu_custom_call.1} parent=5 // pred_region
        // Predicated region
        $region33: #{tpu_custom_call.1} parent=31 // pred_check
          %p236 = pneg %p37
        $region34: #{tpu_custom_call.1} parent=31 // pred_check_branch
          %238 = sbr.rel (%p236) target = $region36
        $region35: #{tpu_custom_call.1} parent=31 // pred_region
          %p239 = scmp.lt.s32.totalorder %s17, 1
          %s240 = scalar_select %p239, %s17, 1
          %s241 = smul.addr %s240, 2
          %s242 = smul.addr %s241, 8
          %s243 = scalar_lea.vmem %s0, %s242
        $region36: #{tpu_custom_call.1} parent=31 // pred_fallthru
          _
        // Predicated region
        $region37: #{tpu_custom_call.1} parent=31 // pred_check
          %p244 = pneg %p63
        $region38: #{tpu_custom_call.1} parent=31 // pred_check_branch
          %246 = sbr.rel (%p244) target = $region40
        $region39: #{tpu_custom_call.1} parent=31 // pred_region
          %p247 = scmp.lt.s32.totalorder %s17, 1
          %s248 = scalar_select %p247, %s17, 1
          %s249 = smul.addr %s248, 2
          %s250 = smul.addr %s249, 8
          %s251 = scalar_lea.vmem %s1, %s250
        $region40: #{tpu_custom_call.1} parent=31 // pred_fallthru
          _
        // Predicated region
        $region41: #{tpu_custom_call.1} parent=31 // pred_check
          %p252 = pneg %p89
        $region42: #{tpu_custom_call.1} parent=31 // pred_check_branch
          %254 = sbr.rel (%p252) target = $region44
        $region43: #{tpu_custom_call.1} parent=31 // pred_region
          %p255 = scmp.lt.s32.totalorder %s17, 1
          %s256 = scalar_select %p255, %s17, 1
          %s257 = smul.addr %s256, 2
          %s258 = smul.addr %s257, 8
          %s259 = scalar_lea.vmem %s2, %s258
        $region44: #{tpu_custom_call.1} parent=31 // pred_fallthru
          _
      $region32: #{tpu_custom_call.1} parent=5 // pred_fallthru
        _
      %p260 = scmp.le.s32.totalorder 1, %s17
      %p261 = scmp.lt.s32.totalorder %s17, 3
      %p262 = pnand %p260, %p261
      %p263 = pneg %p262
      // Predicated region
      $region45: #{tpu_custom_call.1} parent=5 // pred_check
        _
      $region46: #{tpu_custom_call.1} parent=5 // pred_check_branch
        %265 = sbr.rel (%p262) target = $region48
      $region47: #{tpu_custom_call.1} parent=5 // pred_region
        %s266 = ssub.s32 %s17, 1
        %p267 = scmp.lt.s32.totalorder %s22, 1
        %s268 = scalar_select %p267, %s22, 1
        %s269 = smul.addr %s268, 2
        %s270 = smul.addr %s269, 8
        %s271 = scalar_lea.vmem %s0, %s270
        %p272 = pneg %p43
        %p273 = pneg %p40
        %p274 = scmp.lt.s32.totalorder %s22, 1
        %s275 = scalar_select %p274, %s22, 1
        %s276 = smul.addr %s275, 2
        %s277 = smul.addr %s276, 8
        %s278 = scalar_lea.vmem %s1, %s277
        %p279 = pneg %p69
        %p280 = pneg %p66
        %p281 = scmp.lt.s32.totalorder %s22, 1
        %s282 = scalar_select %p281, %s22, 1
        %s283 = smul.addr %s282, 2
        %s284 = smul.addr %s283, 8
        %s285 = scalar_lea.vmem %s2, %s284
        %p286 = pneg %p95
        %p287 = pneg %p92
        %p288 = pneg %p116
        %p289 = pneg %p113
        %p290 = pneg %p137
        %p291 = pneg %p134
        %p292 = pneg %p158
        %p293 = pneg %p155
        %p294 = pneg %p179
        %p295 = pneg %p176
        %p296 = pneg %p205
        %p297 = pneg %p202
        %s298 = sand.u32 %s192, 1
        %s299 = scalar_lea.sflag [#allocation4], %s298
        %s300 = sand.u32 %s192, 1
        %s301 = scalar_lea.vmem [#allocation3], %s300
        %p302 = scmp.lt.s32.totalorder %s22, 1
        %s303 = scalar_select %p302, %s22, 1
        %s304 = smul.addr %s303, 2
        %s305 = smul.addr %s304, 8
        %s306 = scalar_lea.vmem %s0, %s305
        %p307 = scmp.lt.s32.totalorder %s22, 1
        %s308 = scalar_select %p307, %s22, 1
        %s309 = smul.addr %s308, 2
        %s310 = smul.addr %s309, 8
        %s311 = scalar_lea.vmem %s1, %s310
        %p312 = scmp.lt.s32.totalorder %s22, 1
        %s313 = scalar_select %p312, %s22, 1
        %s314 = smul.addr %s313, 2
        %s315 = smul.addr %s314, 8
        %s316 = scalar_lea.vmem %s2, %s315
        %v317 = vld [vmem:[%s306] sm:$0xff]
        %v318 = vld [vmem:[%s306 + $0x8] sm:$0xff]
        %v319 = vld [vmem:[%s311] sm:$0xff]
        %v320 = vld [vmem:[%s311 + $0x8] sm:$0xff]
        %v321 = vld [vmem:[%s316] sm:$0xff]
        %v322 = vld [vmem:[%s316 + $0x8] sm:$0xff]
        %v323 = vld [vmem:[%s3] sm:$0x1]
        %v324 = vld [vmem:[%s4] sm:$0xff]
        %s325 = sld [smem:[#allocation2]]
        %v326 = vld [vmem:[%s6] sm:$0x1]
        %v328 = vlaneseq
        %v329 = vshrl.u32 %v328, 7
        %v330 = vsub.s32 0, %v329
        %v331 = vrot.slane %v323, %v330
        %v333 = vmul.f32 %v321, %v331
        %v334 = vmul.f32 %v322, %v331
        %vm335 = vcmask 31744
        %v336 = vsel %vm335, %v333, 0.0
        %337 = vadd.xlane.f32.xlu0 %v336
        %v338 = vpop.xlane.xlu0 %337
        %v339 = vsel %vm335, %v334, 0.0
        %340 = vadd.xlane.f32.xlu0 %v339
        %v341 = vpop.xlane.xlu0 %340
        %v342 = vmul.f32 %v317, %v338
        %v343 = vmul.f32 %v318, %v341
        %vm344 = vcmask 130048
        %v345 = vsel %vm344, %v342, 0.0
        %v346 = vsel %vm344, %v343, 0.0
        %v347 = vadd.f32 %v345, %v346
        %v348 = vrot.slane %v347, 4
        %v349 = vadd.f32 %v347, %v348
        %v350 = vrot.slane %v349, 2
        %v351 = vadd.f32 %v349, %v350
        %v352 = vrot.slane %v351, 1
        %v353 = vadd.f32 %v351, %v352
        %v354 = vstv %s325
        %v355 = vadd.f32 %v353, %v354
        %357 = vbcast.lane.b32.xlu0 %v355, 256
        %v358 = vpop.permute.xlu0 %357
        %s360 = sor.u32 256, 8
        %361 = vbcast.lane.b32.xlu0 %v355, %s360
        %v362 = vpop.permute.xlu0 %361
        %v363 = vmul.f32 %v319, %v358
        %v364 = vmul.f32 %v320, %v362
        %vm365 = vcmask 64512
        %v366 = vsel %vm365, %v363, 0.0
        %v367 = vsel %vm365, %v364, 0.0
        %v368 = vadd.f32 %v366, %v367
        %v369 = vrot.slane %v368, 4
        %v370 = vadd.f32 %v368, %v369
        %v371 = vrot.slane %v370, 2
        %v372 = vadd.f32 %v370, %v371
        %v373 = vrot.slane %v372, 1
        %v374 = vadd.f32 %v372, %v373
        %376 = vbcast.lane.b32.xlu0 %v374, 256
        %v377 = vpop.permute.xlu0 %376
        %v378 = vmul.f32 %v377, %v324
        %vm379 = vcmask 48128
        %v380 = vsel %vm379, %v378, 0.0
        %v381 = vrot.slane %v380, 4
        %v382 = vadd.f32 %v380, %v381
        %v383 = vrot.slane %v382, 2
        %v384 = vadd.f32 %v382, %v383
        %v385 = vrot.slane %v384, 1
        %v386 = vadd.f32 %v384, %v385
        %v387 = vadd.f32 %v386, %v326
        %vm388 = vcmask 40960
        %389 = vst.msk [vmem:[%s301] sm:$0x1] %vm388, %v387
        %s390 = sand.u32 %s192, 1
        %s391 = scalar_lea.sflag [#allocation4], %s390
        %s392 = sand.u32 %s192, 1
        %s393 = scalar_lea.vmem [#allocation3], %s392
        // Predicated region
        $region49: #{tpu_custom_call.1} parent=47 // pred_check
          %p394 = pneg %p202
        $region50: #{tpu_custom_call.1} parent=47 // pred_check_branch
          %396 = sbr.rel (%p394) target = $region52
        $region51: #{tpu_custom_call.1} parent=47 // pred_region
          %s398 = ssub.s32 16, 16
          %399 = vsyncadd %s391, %s398
          %s400 = smul.addr %s22, 16
          %s401 = scalar_lea.hbm %s7, %s400
          %s403 = sshll.u32 %s393, 4
          %s404 = int_to_ptr.vmem [resolvable:$true] %s403
          %406 = dma.vmem_to_hbm [thread:$0]  %s404, 16, %s401, %s391
        $region52: #{tpu_custom_call.1} parent=47 // pred_fallthru
          _
      $region48: #{tpu_custom_call.1} parent=5 // pred_fallthru
        _
      %p407 = scmp.le.s32.totalorder 2, %s17
      // Predicated region
      $region53: #{tpu_custom_call.1} parent=5 // pred_check
        %p408 = pneg %p407
      $region54: #{tpu_custom_call.1} parent=5 // pred_check_branch
        %410 = sbr.rel (%p408) target = $region56
      $region55: #{tpu_custom_call.1} parent=5 // pred_region
        %s411 = ssub.s32 %s17, 2
        // Predicated region
        $region57: #{tpu_custom_call.1} parent=55 // pred_check
          %p412 = pneg %p208
        $region58: #{tpu_custom_call.1} parent=55 // pred_check_branch
          %414 = sbr.rel (%p412) target = $region60
        $region59: #{tpu_custom_call.1} parent=55 // pred_region
          %s415 = sand.u32 %s193, 1
          %s416 = scalar_lea.sflag [#allocation4], %s415
          %s417 = sand.u32 %s193, 1
          %s418 = scalar_lea.vmem [#allocation3], %s417
          %419 = dma.done %s416, 16
        $region60: #{tpu_custom_call.1} parent=55 // pred_fallthru
          _
      $region56: #{tpu_custom_call.1} parent=5 // pred_fallthru
        _
    $region6: #{tpu_custom_call.1} parent=1 // loop_footer
      %s21 = sadd.s32 1, %s17
    $region7: #{tpu_custom_call.1} parent=1 // loop_footer_branch
      %16 = sbr.rel target = $region3
    $region8: #{tpu_custom_call.1} parent=1 // loop_exit
      _
    %420 = vsyncpa [#allocation4], 1
    %s421 = scalar_lea.sflag [#allocation4], 1
    %422 = vsyncpa %s421, 1

</llo_original>
